<compile_context>
chip_gen: v5e
topology: v5e:2x2
jax: 0.10.0
libtpu: 0.0.40
codegen_flags: <defaults>
</compile_context>

<pallas_src>
import jax
import jax.numpy as jnp
from jax.experimental import pallas as pl
from jax.experimental.pallas import tpu as pltpu


def _copy_kernel(x_ref, o_ref):
    # Identity copy of one lane/sublane-dense, full (unmasked) tile.
    o_ref[...] = x_ref[...]


def _sublane_multiple(dtype):
    """Rows-per-vreg packing factor: 8 for 32-bit, 16 for 16-bit, 32 for 8-bit."""
    itemsize = jnp.dtype(dtype).itemsize
    return {4: 8, 2: 16, 1: 32}.get(itemsize, 8)


_MAX_LANE = 8192       # widest slab lane axis searched
_MAX_TILE_L = 2048     # widest per-tile lane extent
_MAX_TILE_M = 1024     # tallest per-tile sublane extent
_TILE_BYTES = 4 << 20  # <=4 MiB/tile -> <=16 MiB in flight (2x in + 2x out)


def _choose_slab(total, sublane):
    """Pick (M, L) with M*L == total, L % 128 == 0, M % sublane == 0.

    Prefer L that is a multiple of 1024 (so a 1024/2048-wide tile divides it
    evenly -> no ragged column tiles), then fall back to multiples of 128.
    Returns None if no dense factorization exists.
    """
    upper = min(_MAX_LANE, total)
    for step in (1024, 128):
        L = (upper // step) * step
        while L >= step:
            if total % L == 0 and (total // L) % sublane == 0:
                return total // L, L
            L -= step
    return None


def _largest_divisor(n, cap, step):
    """Largest d <= cap with d % step == 0 and n % d == 0 (requires n % step == 0)."""
    d = (min(n, cap) // step) * step
    while d >= step:
        if n % d == 0:
            return d
        d -= step
    return step


def flatten_pallas(x):
    """Pallas equivalent of Flatten().forward(x): (B, ...) -> (B, prod(...))."""
    assert x.ndim > 1
    B = x.shape[0]
    N = 1
    for d in x.shape[1:]:
        N *= d
    total = B * N
    sublane = _sublane_multiple(x.dtype)
    itemsize = jnp.dtype(x.dtype).itemsize

    slab = _choose_slab(total, sublane)
    if slab is None:
        # Perf-review fix: Flatten is a metadata-only view.  For shapes whose
        # element count has no dense (sublane*k x 128*k) factorization, do the
        # reshape without a kernel — a single full-array double-buffered block
        # could exceed scoped VMEM and would store masked, sublane-sparse
        # vregs anyway.
        return x.reshape(B, N)

    M, L = slab
    # Wrapper-side metadata reshape (row-major contiguous -> no data movement).
    x_slab = x.reshape(M, L)

    # Exact-divisor tiles: every block is full -> unmasked, lane-dense stores.
    tile_l = _largest_divisor(L, _MAX_TILE_L, 128)
    m_cap = max(sublane, min(_MAX_TILE_M, _TILE_BYTES // (tile_l * itemsize)))
    tile_m = _largest_divisor(M, m_cap, sublane)
    grid = (M // tile_m, L // tile_l)

    out_slab = pl.pallas_call(
        _copy_kernel,
        out_shape=jax.ShapeDtypeStruct((M, L), x.dtype),
        grid_spec=pltpu.PrefetchScalarGridSpec(
            num_scalar_prefetch=0,
            grid=grid,
            in_specs=[pl.BlockSpec((tile_m, tile_l), lambda i, j: (i, j))],
            out_specs=pl.BlockSpec((tile_m, tile_l), lambda i, j: (i, j)),
        ),
        compiler_params=pltpu.CompilerParams(
            # Independent copy tiles: both axes parallel (shardable across the
            # two TensorCores on v7x; neutral on v5e/v6e).
            dimension_semantics=("parallel", "parallel"),
            # Safe on all generations (<= 64 MiB v7x physical); lifts v5e's
            # 16 MiB scoped default so 4 MiB tiles double-buffer comfortably.
            vmem_limit_bytes=32 << 20,
        ),
    )(x_slab)

    # Metadata reshape back to the PyTorch view shape (B, prod(...)).
    return out_slab.reshape(B, N)


if __name__ == "__main__":
    key = jax.random.PRNGKey(0)
    k1, k2, k3 = jax.random.split(key, 3)

    # 1) Small NCHW input consistent with Flatten's use after conv stacks.
    B, C, H, W = 2, 4, 16, 16
    x = jax.random.normal(k1, (B, C, H, W), dtype=jnp.float32)
    y = jax.block_until_ready(flatten_pallas(x))
    assert y.shape == (B, C * H * W)
    assert y.dtype == x.dtype
    assert bool(jnp.array_equal(y, x.reshape(B, -1)))

    # 2) Larger f32 input: exercises the multi-step, exact-divisor tiled grid
    #    (slab (16, 8192), tiles (16, 2048), grid (1, 4) — no ragged edges).
    x2 = jax.random.normal(k2, (2, 64, 32, 32), dtype=jnp.float32)
    y2 = jax.block_until_ready(flatten_pallas(x2))
    assert bool(jnp.array_equal(y2, x2.reshape(x2.shape[0], -1)))

    # 3) bf16 input: exercises the 16-row sublane-packing path.
    x3 = jax.random.normal(k3, (2, 16, 16, 16), dtype=jnp.bfloat16)
    y3 = jax.block_until_ready(flatten_pallas(x3))
    assert bool(jnp.array_equal(y3, x3.reshape(x3.shape[0], -1)))

    # 4) Odd shape with no dense 128*sublane factorization: safe no-kernel
    #    fallback (metadata-only reshape).
    x4 = jax.random.normal(k1, (3, 5, 7, 11), dtype=jnp.float32)
    y4 = jax.block_until_ready(flatten_pallas(x4))
    assert bool(jnp.array_equal(y4, x4.reshape(x4.shape[0], -1)))

    print("KERNEL_OK")
</pallas_src>

<mosaic_0001>
module attributes {stable_mosaic.version = 11 : i64} {
  func.func @_copy_kernel(%arg0: i32, %arg1: i32, %arg2: memref<8x256xf32, #tpu.memory_space<vmem>>, %arg3: memref<8x256xf32, #tpu.memory_space<vmem>>) attributes {dimension_semantics = [#tpu.dimension_semantics<parallel>, #tpu.dimension_semantics<parallel>], iteration_bounds = array<i64: 1, 1>, scalar_prefetch = 0 : i64, scratch_operands = 0 : i64, tpu.core_type = #tpu.core_type<tc>, window_params = [{transform_indices = @transform_0, window_bounds = array<i64: 8, 256>}, {transform_indices = @transform_1, window_bounds = array<i64: 8, 256>}]} {
    %c0 = arith.constant 0 : index
    %c0_0 = arith.constant 0 : index
    %0 = vector.load %arg2[%c0, %c0_0] : memref<8x256xf32, #tpu.memory_space<vmem>>, vector<8x256xf32>
    %c0_1 = arith.constant 0 : index
    %c0_2 = arith.constant 0 : index
    %1 = vector.load %arg3[%c0_1, %c0_2] : memref<8x256xf32, #tpu.memory_space<vmem>>, vector<8x256xf32>
    tpu.vector_store %arg3[%c0_1, %c0_2], %0 {strides = array<i32>} : memref<8x256xf32, #tpu.memory_space<vmem>>, vector<8x256xf32>,
    return
  }
  func.func @transform_0(%arg0: i32, %arg1: i32) -> (i32, i32) {
    %c0_i32 = arith.constant 0 : i32
    return %arg0, %arg1 : i32, i32
  }
  func.func @transform_1(%arg0: i32, %arg1: i32) -> (i32, i32) {
    %c0_i32 = arith.constant 0 : i32
    return %arg0, %arg1 : i32, i32
  }
}

</mosaic_0001>

<llo_original>
// kernel: tpu_custom_call.1
$region0: #{tpu_custom_call.1}
  #allocation0 [shape = 'u32[]', space=smem, size = 0x4, offset = 0x4, fixed_abs, tag = 'smem constant byte address 0x4 - core index']
  #allocation1 [shape = 'u32[72,128]{1,0:T(1,128)}', space=vmem, size = 0x9000, scoped, tag = 'internal scratch']
  %s0 = inlined_call_operand.hbm [shape: f32[8,256], index: 0, kind: input, shape index: {}]
  %s1 = inlined_call_operand.hbm [shape: f32[8,256], index: 1, kind: output, shape index: {}]
  %s2 = sld [smem:[#allocation0]]
  $region18: #{tpu_custom_call.1} parent=0
    _
  %s4 = ssub.s32 1, %s2
  %s5 = scalar_select 0, %s4, %s2
  $region1: #{tpu_custom_call.1} parent=0
    #allocation2 [shape = 'u8[8192]{0}', space=vmem, size = 0x2000, scoped, tag = 'input window, operand 0, single buffered']
    #allocation3 [shape = 's32[1]{0}', space=sflag, size = 0x4, scoped, tag = 'scoped memory for tpu_custom_call.1']
    #allocation4 [shape = 's32[1]{0}', space=sflag, size = 0x4, scoped, tag = 'scoped memory for tpu_custom_call.1']
    #allocation5 [shape = 'u8[8192]{0}', space=vmem, size = 0x2000, scoped, tag = 'output window, operand 0, single buffered']
    %6 = vsyncpa [#allocation3], 0
    %7 = vsyncpa [#allocation4], 0
    // Predicated region
    $region2: #{tpu_custom_call.1} parent=1 // pred_check
      _
    $region3: #{tpu_custom_call.1} parent=1 // pred_check_branch
      %9 = sbr.rel (0) target = $region5
    $region4: #{tpu_custom_call.1} parent=1 // pred_region
      %11 = vsyncadd [#allocation3], 0
      %s13 = sshll.u32 %s0, 4
      %s14 = int_to_ptr.hbm [resolvable:$true] %s13
      %s15 = sshll.u32 [#allocation2], 4
      %s16 = int_to_ptr.vmem [resolvable:$true] %s15
      %18 = dma.hbm_to_vmem [thread:$0]  %s14, 256, %s16, [#allocation3]
    $region5: #{tpu_custom_call.1} parent=1 // pred_fallthru
      _
    // Predicated region
    $region6: #{tpu_custom_call.1} parent=1 // pred_check
      _
    $region7: #{tpu_custom_call.1} parent=1 // pred_check_branch
      %20 = sbr.rel (0) target = $region9
    $region8: #{tpu_custom_call.1} parent=1 // pred_region
      %22 = dma.done [#allocation3], 256
    $region9: #{tpu_custom_call.1} parent=1 // pred_fallthru
      _
    %v23 = vld [vmem:[#allocation2] sm:$0xff]
    %v24 = vld [vmem:[#allocation2 + $0x8] sm:$0xff]
    %25 = vst [vmem:[#allocation5] sm:$0xff] %v23
    %26 = vst [vmem:[#allocation5 + $0x8] sm:$0xff] %v24
    // Predicated region
    $region10: #{tpu_custom_call.1} parent=1 // pred_check
      _
    $region11: #{tpu_custom_call.1} parent=1 // pred_check_branch
      %28 = sbr.rel (0) target = $region13
    $region12: #{tpu_custom_call.1} parent=1 // pred_region
      %30 = vsyncadd [#allocation4], 0
      %s32 = sshll.u32 [#allocation5], 4
      %s33 = int_to_ptr.vmem [resolvable:$true] %s32
      %s34 = sshll.u32 %s1, 4
      %s35 = int_to_ptr.hbm [resolvable:$true] %s34
      %37 = dma.vmem_to_hbm [thread:$0]  %s33, 256, %s35, [#allocation4]
    $region13: #{tpu_custom_call.1} parent=1 // pred_fallthru
      _
    // Predicated region
    $region14: #{tpu_custom_call.1} parent=1 // pred_check
      _
    $region15: #{tpu_custom_call.1} parent=1 // pred_check_branch
      %39 = sbr.rel (0) target = $region17
    $region16: #{tpu_custom_call.1} parent=1 // pred_region
      %41 = dma.done [#allocation4], 256
    $region17: #{tpu_custom_call.1} parent=1 // pred_fallthru
      _
    %42 = vsyncpa [#allocation3], 1
    %43 = vsyncpa [#allocation4], 1

</llo_original>
